<compile_context>
chip_gen: v6e
topology: v6e:2x2x1
jax: 0.10.0
libtpu: 0.0.40
codegen_flags: <defaults>
</compile_context>

<pallas_src>
import functools

import jax
import jax.numpy as jnp
from jax import lax
from jax.experimental import pallas as pl
from jax.experimental.pallas import tpu as pltpu

LANE = 128


def _round_up(x, m):
    return ((x + m - 1) // m) * m


def prepare_params(mat_a, mat_b, mat_c, *, weight_dtype=jnp.float32):
    """Pack (A, B, C) into two lane-dense weight matrices (init-time, once).

    wc  = round_up(N + O, 128)  (single 128-lane output tile when N+O <= 128)
    W_x : (wc, wc) -- rows 0..N hold [A | A@C], rows N.. are zero, so the full
                      packed state vector is a valid MXU LHS with no slicing.
    W_u : (I,  wc) -- [B | B@C]
    Note: y = x@(A@C) + u@(B@C) == (x@A + u@B)@C up to float associativity.
    """
    n = mat_a.shape[0]
    i = mat_b.shape[0]
    o = mat_c.shape[1]
    wc = _round_up(n + o, LANE)
    w_x = jnp.zeros((wc, wc), jnp.float32)
    w_x = w_x.at[:n, :n].set(mat_a)
    w_x = w_x.at[:n, n:n + o].set(mat_a @ mat_c)
    w_u = jnp.zeros((i, wc), jnp.float32)
    w_u = w_u.at[:, :n].set(mat_b)
    w_u = w_u.at[:, n:n + o].set(mat_b @ mat_c)
    return w_x.astype(weight_dtype), w_u.astype(weight_dtype), (n, i, o, wc)


# ---------------------------------------------------------------------------
# Single-step kernel (matches LinearController.forward).  At these shapes this
# is dispatch-overhead dominated; the Pallas value is in the fused rollout.
# ---------------------------------------------------------------------------
def _single_step_kernel(x_ref, u_ref, wx_ref, wu_ref, out_ref, *, n):
    acc = jnp.dot(x_ref[...].astype(wx_ref.dtype), wx_ref[:n, :],
                  preferred_element_type=jnp.float32)
    acc = acc + jnp.dot(u_ref[...].astype(wu_ref.dtype), wu_ref[...],
                        preferred_element_type=jnp.float32)
    out_ref[...] = acc.astype(out_ref.dtype)   # single full-width 128-lane tile


def linear_controller_forward(x, u, w_x, w_u, dims):
    """One controller step. Returns (x_new, y) like the PyTorch module."""
    n, i, o, wc = dims
    b = x.shape[0]
    vmem = pl.BlockSpec(memory_space=pltpu.MemorySpace.VMEM)
    out = pl.pallas_call(
        functools.partial(_single_step_kernel, n=n),
        out_shape=jax.ShapeDtypeStruct((b, wc), x.dtype),
        in_specs=[vmem, vmem, vmem, vmem],
        out_specs=vmem,
    )(x, u, w_x, w_u)
    return out[:, :n], out[:, n:n + o]


# ---------------------------------------------------------------------------
# Rollout kernel: T steps in one pallas_call, Tc steps per grid iteration.
# ---------------------------------------------------------------------------
def _rollout_kernel(ub_ref, x0_ref, wx_ref, out_ref, xc_ref, *, n, tc, unroll):
    c = pl.program_id(0)

    @pl.when(c == 0)
    def _():
        # One-time init of the packed f32 carry (masked store only happens once).
        xc_ref[...] = jnp.zeros_like(xc_ref)
        xc_ref[:, :n] = x0_ref[...].astype(jnp.float32)

    w = wx_ref[...]  # weights VMEM/vreg-resident for the whole chunk

    def step(s, carry):
        # packed_{t+1} = packed_t @ [A|A@C]  +  (u_t @ [B|B@C])   (f32 accumulate)
        packed = jnp.dot(carry.astype(w.dtype), w,
                         preferred_element_type=jnp.float32)
        packed = packed + ub_ref[s]
        out_ref[s] = packed.astype(out_ref.dtype)   # full-width unmasked store
        return packed

    xc_ref[...] = lax.fori_loop(0, tc, step, xc_ref[...], unroll=unroll)


def linear_controller_rollout(x0, u_seq, w_x, w_u, dims, *,
                              time_chunk=8, unroll=4):
    """Run the controller over a (T, B, I) input sequence.

    Returns (x_seq, y_seq) with x_seq[t] = x_{t+1}, y_seq[t] = x_{t+1} @ C.
    time_chunk (Tc) sets steps per grid iteration; size it so
    ~2 * Tc * B * wc * 4 bytes (double-buffered UB + out blocks) fits scoped
    VMEM on the target generation (v7x: 64 MiB physical / 32 MiB scoped).
    """
    n, i, o, wc = dims
    t_steps, b, _ = u_seq.shape
    tc = min(time_chunk, t_steps)
    t_pad = _round_up(t_steps, tc)

    # Phase 0 (outside the serial chain): one large parallel matmul for the
    # input-driven term UB[t] = u_t @ [B | B@C].  This keeps the MXU busy on
    # a (T*B, I) @ (I, wc) problem instead of T tiny serial matmuls.
    ub = (u_seq.reshape(t_steps * b, i).astype(w_u.dtype) @ w_u)
    ub = ub.astype(jnp.float32).reshape(t_steps, b, wc)
    if t_pad != t_steps:
        ub = jnp.pad(ub, ((0, t_pad - t_steps), (0, 0), (0, 0)))

    out = pl.pallas_call(
        functools.partial(_rollout_kernel, n=n, tc=tc, unroll=unroll),
        out_shape=jax.ShapeDtypeStruct((t_pad, b, wc), x0.dtype),
        grid=(t_pad // tc,),
        in_specs=[
            pl.BlockSpec((tc, b, wc), lambda c: (c, 0, 0)),  # UB chunk per step
            pl.BlockSpec((b, n), lambda c: (0, 0)),          # x0: fetched once
            pl.BlockSpec((wc, wc), lambda c: (0, 0)),        # W_x: VMEM-resident
        ],
        out_specs=pl.BlockSpec((tc, b, wc), lambda c: (c, 0, 0)),
        scratch_shapes=[pltpu.VMEM((b, wc), jnp.float32)],   # packed state carry
        compiler_params=pltpu.CompilerParams(
            # Serial state carry: this axis must stay "arbitrary" (never parallel).
            dimension_semantics=("arbitrary",),
        ),
        cost_estimate=pl.CostEstimate(
            flops=2 * t_pad * b * wc * wc,
            transcendentals=0,
            bytes_accessed=(ub.size * 4
                            + x0.size * x0.dtype.itemsize
                            + w_x.size * w_x.dtype.itemsize
                            + t_pad * b * wc * x0.dtype.itemsize),
        ),
    )(ub, x0, w_x)
    out = out[:t_steps]
    return out[:, :, :n], out[:, :, n:n + o]


def make_params(key, inputs_count, outputs_count, internal_size,
                init_range=0.01, dtype=jnp.float32):
    """Deterministic parameter init mirroring the PyTorch __init__ shapes."""
    ka, kb, kc = jax.random.split(key, 3)
    mat_a = init_range * jax.random.normal(ka, (internal_size, internal_size), dtype)
    mat_b = init_range * jax.random.normal(kb, (inputs_count, internal_size), dtype)
    mat_c = init_range * jax.random.normal(kc, (internal_size, outputs_count), dtype)
    return mat_a, mat_b, mat_c


if __name__ == "__main__":
    batch = 8
    inputs_count = 16
    outputs_count = 4
    internal_size = 32
    steps = 6

    key = jax.random.PRNGKey(0)
    kparams, kx, ku, kus = jax.random.split(key, 4)

    mat_a, mat_b, mat_c = make_params(kparams, inputs_count, outputs_count,
                                      internal_size)
    x = jax.random.normal(kx, (batch, internal_size), jnp.float32)
    u = jax.random.normal(ku, (batch, inputs_count), jnp.float32)
    u_seq = jax.random.normal(kus, (steps, batch, inputs_count), jnp.float32)

    # One-time weight packing (init-time, not per control step).
    w_x, w_u, dims = prepare_params(mat_a, mat_b, mat_c)

    # --- single step: matches LinearController.forward ---
    x_new, y = linear_controller_forward(x, u, w_x, w_u, dims)
    jax.block_until_ready((x_new, y))

    x_new_ref = x @ mat_a + u @ mat_b
    y_ref = x_new_ref @ mat_c
    assert jnp.allclose(x_new, x_new_ref, atol=1e-5, rtol=1e-4)
    assert jnp.allclose(y, y_ref, atol=1e-5, rtol=1e-4)

    # --- rollout: T forward steps fused into a single pallas_call ---
    x_seq, y_seq = linear_controller_rollout(x, u_seq, w_x, w_u, dims,
                                             time_chunk=8, unroll=4)
    jax.block_until_ready((x_seq, y_seq))

    state = x
    xs, ys = [], []
    for t in range(steps):
        state = state @ mat_a + u_seq[t] @ mat_b
        xs.append(state)
        ys.append(state @ mat_c)
    x_seq_ref = jnp.stack(xs)
    y_seq_ref = jnp.stack(ys)
    assert jnp.allclose(x_seq, x_seq_ref, atol=1e-5, rtol=1e-4)
    assert jnp.allclose(y_seq, y_seq_ref, atol=1e-5, rtol=1e-4)

    print("KERNEL_OK")
</pallas_src>

<mosaic_0001>
module attributes {stable_mosaic.version = 11 : i64} {
  func.func @_single_step_kernel(%arg0: memref<8x32xf32, #tpu.memory_space<vmem>>, %arg1: memref<8x16xf32, #tpu.memory_space<vmem>>, %arg2: memref<128x128xf32, #tpu.memory_space<vmem>>, %arg3: memref<16x128xf32, #tpu.memory_space<vmem>>, %arg4: memref<8x128xf32, #tpu.memory_space<vmem>>) attributes {dimension_semantics = [], scalar_prefetch = 0 : i64, scratch_operands = 0 : i64, tpu.core_type = #tpu.core_type<tc>} {
    %c0 = arith.constant 0 : index
    %c0_0 = arith.constant 0 : index
    %0 = vector.load %arg0[%c0, %c0_0] : memref<8x32xf32, #tpu.memory_space<vmem>>, vector<8x32xf32>
    %c0_1 = arith.constant 0 : index
    %c0_2 = arith.constant 0 : index
    %1 = vector.load %arg2[%c0_1, %c0_2] : memref<128x128xf32, #tpu.memory_space<vmem>>, vector<32x128xf32>
    %cst = arith.constant dense<0.000000e+00> : vector<8x128xf32>
    %2 = tpu.matmul %0, %1, %cst {dimension_numbers = #tpu.dot_dimension_numbers<[1], [0], [0], [1], [0, 0, 1, 1], [], []>} : vector<8x32xf32>, vector<32x128xf32>, vector<8x128xf32> -> vector<8x128xf32>
    %c0_3 = arith.constant 0 : index
    %c0_4 = arith.constant 0 : index
    %3 = vector.load %arg1[%c0_3, %c0_4] : memref<8x16xf32, #tpu.memory_space<vmem>>, vector<8x16xf32>
    %c0_5 = arith.constant 0 : index
    %c0_6 = arith.constant 0 : index
    %4 = vector.load %arg3[%c0_5, %c0_6] : memref<16x128xf32, #tpu.memory_space<vmem>>, vector<16x128xf32>
    %cst_7 = arith.constant dense<0.000000e+00> : vector<8x128xf32>
    %5 = tpu.matmul %3, %4, %cst_7 {dimension_numbers = #tpu.dot_dimension_numbers<[1], [0], [0], [1], [0, 0, 1, 1], [], []>} : vector<8x16xf32>, vector<16x128xf32>, vector<8x128xf32> -> vector<8x128xf32>
    %6 = arith.addf %2, %5 : vector<8x128xf32>
    %c0_8 = arith.constant 0 : index
    %c0_9 = arith.constant 0 : index
    %7 = vector.load %arg4[%c0_8, %c0_9] : memref<8x128xf32, #tpu.memory_space<vmem>>, vector<8x128xf32>
    tpu.vector_store %arg4[%c0_8, %c0_9], %6 {strides = array<i32>} : memref<8x128xf32, #tpu.memory_space<vmem>>, vector<8x128xf32>,
    return
  }
}

</mosaic_0001>

<llo_original>
// kernel: tpu_custom_call.1
$region0: #{tpu_custom_call.1}
  #allocation0 [shape = 'u32[]', space=smem, size = 0x4, offset = 0x4, fixed_abs, tag = 'smem constant byte address 0x4 - core index']
  #allocation1 [shape = 'u32[144,128]{1,0:T(1,128)}', space=vmem, size = 0x12000, scoped, tag = 'internal scratch']
  %s0 = inlined_call_operand.hbm [shape: f32[8,32], index: 0, kind: input, shape index: {}]
  %s1 = inlined_call_operand.hbm [shape: f32[8,16], index: 1, kind: input, shape index: {}]
  %s2 = inlined_call_operand.hbm [shape: f32[128,128], index: 2, kind: input, shape index: {}]
  %s3 = inlined_call_operand.hbm [shape: f32[16,128], index: 3, kind: input, shape index: {}]
  %s4 = inlined_call_operand.hbm [shape: f32[8,128], index: 4, kind: output, shape index: {}]
  %s5 = sld [smem:[#allocation0]]
  $region42: #{tpu_custom_call.1} parent=0
    _
  %s7 = ssub.s32 1, %s5
  %s8 = scalar_select 0, %s7, %s5
  $region1: #{tpu_custom_call.1} parent=0
    #allocation2 [shape = 'u8[4096]{0}', space=vmem, size = 0x1000, scoped, tag = 'input window, operand 0, single buffered']
    #allocation3 [shape = 's32[1]{0}', space=sflag, size = 0x4, scoped, tag = 'scoped memory for tpu_custom_call.1']
    #allocation4 [shape = 's32[1]{0}', space=sflag, size = 0x4, scoped, tag = 'scoped memory for tpu_custom_call.1']
    #allocation5 [shape = 'u8[4096]{0}', space=vmem, size = 0x1000, scoped, tag = 'input window, operand 1, single buffered']
    #allocation6 [shape = 's32[1]{0}', space=sflag, size = 0x4, scoped, tag = 'scoped memory for tpu_custom_call.1']
    #allocation7 [shape = 'u8[65536]{0}', space=vmem, size = 0x10000, scoped, tag = 'input window, operand 2, single buffered']
    #allocation8 [shape = 'u8[8192]{0}', space=vmem, size = 0x2000, scoped, tag = 'input window, operand 3, single buffered']
    #allocation9 [shape = 's32[1]{0}', space=sflag, size = 0x4, scoped, tag = 'scoped memory for tpu_custom_call.1']
    #allocation10 [shape = 'u8[4096]{0}', space=vmem, size = 0x1000, scoped, tag = 'output window, operand 0, single buffered']
    %9 = vsyncpa [#allocation3], 0
    %10 = vsyncpa [#allocation6], 0
    %11 = vsyncpa [#allocation9], 0
    %12 = vsyncpa [#allocation4], 0
    // Predicated region
    $region2: #{tpu_custom_call.1} parent=1 // pred_check
      _
    $region3: #{tpu_custom_call.1} parent=1 // pred_check_branch
      %14 = sbr.rel (0) target = $region5
    $region4: #{tpu_custom_call.1} parent=1 // pred_region
      %s16 = ssub.s32 128, 128
      %17 = vsyncadd [#allocation3], %s16
      %s19 = sshll.u32 [#allocation2], 4
      %s20 = int_to_ptr.vmem [resolvable:$true] %s19
      %22 = dma.hbm_to_vmem [thread:$0]  %s0, 128, %s20, [#allocation3]
    $region5: #{tpu_custom_call.1} parent=1 // pred_fallthru
      _
    // Predicated region
    $region6: #{tpu_custom_call.1} parent=1 // pred_check
      _
    $region7: #{tpu_custom_call.1} parent=1 // pred_check_branch
      %24 = sbr.rel (0) target = $region9
    $region8: #{tpu_custom_call.1} parent=1 // pred_region
      %s26 = ssub.s32 128, 128
      %27 = vsyncadd [#allocation6], %s26
      %s29 = sshll.u32 [#allocation5], 4
      %s30 = int_to_ptr.vmem [resolvable:$true] %s29
      %32 = dma.hbm_to_vmem [thread:$0]  %s1, 128, %s30, [#allocation6]
    $region9: #{tpu_custom_call.1} parent=1 // pred_fallthru
      _
    // Predicated region
    $region10: #{tpu_custom_call.1} parent=1 // pred_check
      _
    $region11: #{tpu_custom_call.1} parent=1 // pred_check_branch
      %34 = sbr.rel (0) target = $region13
    $region12: #{tpu_custom_call.1} parent=1 // pred_region
      %s36 = ssub.s32 2048, 2048
      %37 = vsyncadd [#allocation6], %s36
      %s38 = sshll.u32 [#allocation7], 4
      %s39 = int_to_ptr.vmem [resolvable:$true] %s38
      %44 = dma.hbm_to_vmem [thread:$0]  %s2, 2048, %s39, [#allocation6], 128, 128, 8
    $region13: #{tpu_custom_call.1} parent=1 // pred_fallthru
      _
    // Predicated region
    $region14: #{tpu_custom_call.1} parent=1 // pred_check
      _
    $region15: #{tpu_custom_call.1} parent=1 // pred_check_branch
      %46 = sbr.rel (0) target = $region17
    $region16: #{tpu_custom_call.1} parent=1 // pred_region
      %s48 = ssub.s32 256, 256
      %49 = vsyncadd [#allocation9], %s48
      %s50 = sshll.u32 [#allocation8], 4
      %s51 = int_to_ptr.vmem [resolvable:$true] %s50
      %56 = dma.hbm_to_vmem [thread:$0]  %s3, 256, %s51, [#allocation9], 128, 128, 8
    $region17: #{tpu_custom_call.1} parent=1 // pred_fallthru
      _
    // Predicated region
    $region18: #{tpu_custom_call.1} parent=1 // pred_check
      _
    $region19: #{tpu_custom_call.1} parent=1 // pred_check_branch
      %58 = sbr.rel (0) target = $region21
    $region20: #{tpu_custom_call.1} parent=1 // pred_region
      %59 = dma.done [#allocation3], 128
    $region21: #{tpu_custom_call.1} parent=1 // pred_fallthru
      _
    // Predicated region
    $region22: #{tpu_custom_call.1} parent=1 // pred_check
      _
    $region23: #{tpu_custom_call.1} parent=1 // pred_check_branch
      %61 = sbr.rel (0) target = $region25
    $region24: #{tpu_custom_call.1} parent=1 // pred_region
      %62 = dma.done [#allocation6], 128
    $region25: #{tpu_custom_call.1} parent=1 // pred_fallthru
      _
    // Predicated region
    $region26: #{tpu_custom_call.1} parent=1 // pred_check
      _
    $region27: #{tpu_custom_call.1} parent=1 // pred_check_branch
      %64 = sbr.rel (0) target = $region29
    $region28: #{tpu_custom_call.1} parent=1 // pred_region
      %65 = dma.done [#allocation6], 2048
    $region29: #{tpu_custom_call.1} parent=1 // pred_fallthru
      _
    // Predicated region
    $region30: #{tpu_custom_call.1} parent=1 // pred_check
      _
    $region31: #{tpu_custom_call.1} parent=1 // pred_check_branch
      %67 = sbr.rel (0) target = $region33
    $region32: #{tpu_custom_call.1} parent=1 // pred_region
      %68 = dma.done [#allocation9], 256
    $region33: #{tpu_custom_call.1} parent=1 // pred_fallthru
      _
    %v69 = vld [vmem:[#allocation2] sm:$0xff]
    %v70 = vld [vmem:[#allocation7] sm:$0xff]
    %v71 = vld [vmem:[#allocation7 + $0x8] sm:$0xff]
    %v72 = vld [vmem:[#allocation7 + $0x10] sm:$0xff]
    %v73 = vld [vmem:[#allocation7 + $0x18] sm:$0xff]
    %v74 = vld [vmem:[#allocation5] sm:$0xff]
    %v75 = vld [vmem:[#allocation8] sm:$0xff]
    %v76 = vld [vmem:[#allocation8 + $0x8] sm:$0xff]
    %vm77 = vcmask 130048
    %v79 = vsel %vm77, %v74, 0
    %81 = vmatprep.subr.mxu0 0.0
    %82 = vmatpush1.msra.mxu0 0.0
    %83 = vmatprep.subr.mxu0 0.0
    %84 = vmatpush1.msra.mxu0 0.0
    %85 = vmatprep.subr.mxu0 0.0
    %86 = vmatpush1.msra.mxu0 0.0
    %87 = vmatprep.subr.mxu0 0.0
    %88 = vmatpush1.msra.mxu0 0.0
    %89 = vmatprep.subr.mxu0 0.0
    %90 = vmatpush1.msra.mxu0 0.0
    %91 = vmatprep.subr.mxu0 0.0
    %92 = vmatpush1.msra.mxu0 0.0
    %93 = vmatprep.subr.mxu0 0.0
    %94 = vmatpush1.msra.mxu0 0.0
    %95 = vmatprep.subr.mxu0 0.0
    %96 = vmatpush1.msra.mxu0 0.0
    %97 = vmatprep.subr.mxu0 0.0
    %98 = vmatpush1.msra.mxu0 0.0
    %99 = vmatprep.subr.mxu0 0.0
    %100 = vmatpush1.msra.mxu0 0.0
    %101 = vmatprep.subr.mxu0 0.0
    %102 = vmatpush1.msra.mxu0 0.0
    %103 = vmatprep.subr.mxu0 0.0
    %104 = vmatpush1.msra.mxu0 0.0
    %105 = vmatprep.subr.mxu0 0.0
    %106 = vmatpush1.msra.mxu0 0.0
    %107 = vmatprep.subr.mxu0 0.0
    %108 = vmatpush1.msra.mxu0 0.0
    %109 = vmatprep.subr.mxu0 0.0
    %110 = vmatpush1.msra.mxu0 %v76
    %111 = vmatprep.subr.mxu0 0.0
    %112 = vmatpush1.msra.mxu0 %v75
    %113 = vmatprep.subr.mxu0 0.0
    %114 = vmatpush2.msra.mxu0 0.0
    %115 = vmatprep.subr.mxu0 0.0
    %116 = vmatpush2.msra.mxu0 0.0
    %117 = vmatprep.subr.mxu0 0.0
    %118 = vmatpush2.msra.mxu0 0.0
    %119 = vmatprep.subr.mxu0 0.0
    %120 = vmatpush2.msra.mxu0 0.0
    %121 = vmatprep.subr.mxu0 0.0
    %122 = vmatpush2.msra.mxu0 0.0
    %123 = vmatprep.subr.mxu0 0.0
    %124 = vmatpush2.msra.mxu0 0.0
    %125 = vmatprep.subr.mxu0 0.0
    %126 = vmatpush2.msra.mxu0 0.0
    %127 = vmatprep.subr.mxu0 0.0
    %128 = vmatpush2.msra.mxu0 0.0
    %129 = vmatprep.subr.mxu0 0.0
    %130 = vmatpush2.msra.mxu0 0.0
    %131 = vmatprep.subr.mxu0 0.0
    %132 = vmatpush2.msra.mxu0 0.0
    %133 = vmatprep.subr.mxu0 0.0
    %134 = vmatpush2.msra.mxu0 0.0
    %135 = vmatprep.subr.mxu0 0.0
    %136 = vmatpush2.msra.mxu0 0.0
    %137 = vmatprep.subr.mxu0 0.0
    %138 = vmatpush2.msra.mxu0 0.0
    %139 = vmatprep.subr.mxu0 0.0
    %140 = vmatpush2.msra.mxu0 0.0
    %141 = vmatprep.subr.mxu0 0.0
    %142 = vmatpush2.msra.mxu0 0.0
    %143 = vmatprep.subr.mxu0 0.0
    %144 = vmatpush2.msra.mxu0 0.0
    %145 = vmatprep.mubr.f32.mxu0 0.0
    %146 = vmatmul.mubr.f32.gmra.mxu0 %v79
    %v147 = vpop.f32.mrf.mxu0
    %v148 = vadd.f32 0.0, %v147
    %v149 = vpop.f32.mrf.mxu0
    %150 = vdwg.mxu0
    %vm151 = vcmask 261120
    %v153 = vsel %vm151, %v69, 0
    %155 = vmatprep.subr.mxu0 0.0
    %156 = vmatpush1.msra.mxu0 0.0
    %157 = vmatprep.subr.mxu0 0.0
    %158 = vmatpush1.msra.mxu0 0.0
    %159 = vmatprep.subr.mxu0 0.0
    %160 = vmatpush1.msra.mxu0 0.0
    %161 = vmatprep.subr.mxu0 0.0
    %162 = vmatpush1.msra.mxu0 0.0
    %163 = vmatprep.subr.mxu0 0.0
    %164 = vmatpush1.msra.mxu0 0.0
    %165 = vmatprep.subr.mxu0 0.0
    %166 = vmatpush1.msra.mxu0 0.0
    %167 = vmatprep.subr.mxu0 0.0
    %168 = vmatpush1.msra.mxu0 0.0
    %169 = vmatprep.subr.mxu0 0.0
    %170 = vmatpush1.msra.mxu0 0.0
    %171 = vmatprep.subr.mxu0 0.0
    %172 = vmatpush1.msra.mxu0 0.0
    %173 = vmatprep.subr.mxu0 0.0
    %174 = vmatpush1.msra.mxu0 0.0
    %175 = vmatprep.subr.mxu0 0.0
    %176 = vmatpush1.msra.mxu0 0.0
    %177 = vmatprep.subr.mxu0 0.0
    %178 = vmatpush1.msra.mxu0 0.0
    %179 = vmatprep.subr.mxu0 0.0
    %180 = vmatpush1.msra.mxu0 %v73
    %181 = vmatprep.subr.mxu0 0.0
    %182 = vmatpush1.msra.mxu0 %v72
    %183 = vmatprep.subr.mxu0 0.0
    %184 = vmatpush1.msra.mxu0 %v71
    %185 = vmatprep.subr.mxu0 0.0
    %186 = vmatpush1.msra.mxu0 %v70
    %187 = vmatprep.subr.mxu0 0.0
    %188 = vmatpush2.msra.mxu0 0.0
    %189 = vmatprep.subr.mxu0 0.0
    %190 = vmatpush2.msra.mxu0 0.0
    %191 = vmatprep.subr.mxu0 0.0
    %192 = vmatpush2.msra.mxu0 0.0
    %193 = vmatprep.subr.mxu0 0.0
    %194 = vmatpush2.msra.mxu0 0.0
    %195 = vmatprep.subr.mxu0 0.0
    %196 = vmatpush2.msra.mxu0 0.0
    %197 = vmatprep.subr.mxu0 0.0
    %198 = vmatpush2.msra.mxu0 0.0
    %199 = vmatprep.subr.mxu0 0.0
    %200 = vmatpush2.msra.mxu0 0.0
    %201 = vmatprep.subr.mxu0 0.0
    %202 = vmatpush2.msra.mxu0 0.0
    %203 = vmatprep.subr.mxu0 0.0
    %204 = vmatpush2.msra.mxu0 0.0
    %205 = vmatprep.subr.mxu0 0.0
    %206 = vmatpush2.msra.mxu0 0.0
    %207 = vmatprep.subr.mxu0 0.0
    %208 = vmatpush2.msra.mxu0 0.0
    %209 = vmatprep.subr.mxu0 0.0
    %210 = vmatpush2.msra.mxu0 0.0
    %211 = vmatprep.subr.mxu0 0.0
    %212 = vmatpush2.msra.mxu0 0.0
    %213 = vmatprep.subr.mxu0 0.0
    %214 = vmatpush2.msra.mxu0 0.0
    %215 = vmatprep.subr.mxu0 0.0
    %216 = vmatpush2.msra.mxu0 0.0
    %217 = vmatprep.subr.mxu0 0.0
    %218 = vmatpush2.msra.mxu0 0.0
    %219 = vmatprep.mubr.f32.mxu0 0.0
    %220 = vmatmul.mubr.f32.gmra.mxu0 %v153
    %v221 = vpop.f32.mrf.mxu0
    %v222 = vadd.f32 %v148, %v221
    %v223 = vpop.f32.mrf.mxu0
    %224 = vdwg.mxu0
    %225 = vst [vmem:[#allocation10] sm:$0xff] %v222
    // Predicated region
    $region34: #{tpu_custom_call.1} parent=1 // pred_check
      _
    $region35: #{tpu_custom_call.1} parent=1 // pred_check_branch
      %227 = sbr.rel (0) target = $region37
    $region36: #{tpu_custom_call.1} parent=1 // pred_region
      %s229 = ssub.s32 128, 128
      %230 = vsyncadd [#allocation4], %s229
      %s232 = sshll.u32 [#allocation10], 4
      %s233 = int_to_ptr.vmem [resolvable:$true] %s232
      %235 = dma.vmem_to_hbm [thread:$0]  %s233, 128, %s4, [#allocation4]
    $region37: #{tpu_custom_call.1} parent=1 // pred_fallthru
      _
    // Predicated region
    $region38: #{tpu_custom_call.1} parent=1 // pred_check
      _
    $region39: #{tpu_custom_call.1} parent=1 // pred_check_branch
      %237 = sbr.rel (0) target = $region41
    $region40: #{tpu_custom_call.1} parent=1 // pred_region
      %238 = dma.done [#allocation4], 128
    $region41: #{tpu_custom_call.1} parent=1 // pred_fallthru
      _
    %239 = vsyncpa [#allocation3], 1
    %240 = vsyncpa [#allocation6], 1
    %241 = vsyncpa [#allocation9], 1
    %242 = vsyncpa [#allocation4], 1

</llo_original>
